<compile_context>
chip_gen: v7x
topology: tpu7x:2x2x1
jax: 0.10.0
libtpu: 0.0.40
codegen_flags: <defaults>
</compile_context>

<pallas_src>
import math

import jax
import jax.numpy as jnp
from jax.experimental import pallas as pl
from jax.experimental.pallas import tpu as pltpu


def _round_up(x, m):
    return ((x + m - 1) // m) * m


def _cdiv(a, b):
    return (a + b - 1) // b


# ---------------------------------------------------------------------------
# Kernel: one (tile_m, tile_c) output tile = x_tile @ wt_tile + bias_tile.
# The narrowing cast of x to the MXU compute dtype (if any) happens here, on
# the VPU, hidden under the DMA/MXU, so x is read from HBM exactly once.
# ---------------------------------------------------------------------------
def _make_logits_kernel(compute_dtype):
    compute_dtype = jnp.dtype(compute_dtype)

    def kernel(x_ref, wt_ref, b_ref, o_ref):
        xv = x_ref[...]
        if xv.dtype != compute_dtype:
            xv = xv.astype(compute_dtype)
        logits = jnp.dot(xv, wt_ref[...], preferred_element_type=jnp.float32)
        o_ref[...] = (logits + b_ref[...]).astype(o_ref.dtype)

    return kernel


# ---------------------------------------------------------------------------
# One-time layout prep (hoist out of the hot loop; constant-folds under jit).
# ---------------------------------------------------------------------------
def prepare_selector_params(relation_weight, bias, *, compute_dtype=jnp.float32):
    """Transpose to (D, Cp), pad class axis to a 128 multiple, cast once.

    Returns (wt, bias2d, num_classes) ready for selector_logits_prepared.
    """
    C, D = relation_weight.shape
    Cp = _round_up(C, 128)                              # lane-dense class axis
    wt = relation_weight.T.astype(compute_dtype)        # (D, C): no in-kernel .T
    b = bias.astype(jnp.float32)
    if Cp != C:
        wt = jnp.pad(wt, ((0, 0), (0, Cp - C)))
        b = jnp.pad(b, (0, Cp - C))
    return wt, b.reshape(1, Cp), C


# ---------------------------------------------------------------------------
# Hot path: assumes prepared (D, Cp) weight and (1, Cp) f32 bias.
# ---------------------------------------------------------------------------
def selector_logits_prepared(x, wt, bias2d, num_classes, *,
                             compute_dtype=jnp.float32,
                             out_dtype=jnp.float32,
                             max_tile_m=512,
                             max_tile_c=512,
                             weight_resident_bytes=4 << 20):
    N, D = x.shape
    Dw, Cp = wt.shape
    assert D == Dw, (D, Dw)
    assert bias2d.shape == (1, Cp), (bias2d.shape, Cp)
    assert Cp % 128 == 0, Cp

    compute_dtype = jnp.dtype(compute_dtype)
    x_itemsize = jnp.dtype(x.dtype).itemsize
    w_itemsize = jnp.dtype(wt.dtype).itemsize
    out_itemsize = jnp.dtype(out_dtype).itemsize

    # ---- class-axis tiling: keep the whole weight resident when it fits ----
    if D * Cp * w_itemsize <= weight_resident_bytes or Cp <= max_tile_c:
        tile_c = Cp                      # constant block index -> fetched once
    else:
        tile_c = 128
        for cand in range((max_tile_c // 128) * 128, 127, -128):
            if Cp % cand == 0:           # 128-multiple divisor of Cp: no over-pad
                tile_c = cand
                break
    grid_c = Cp // tile_c
    # NOTE: when streaming (grid_c > 1) with small D, pipeline_mode=pl.Buffered(3)
    # on the weight BlockSpec is a further few-percent option; not used here.

    # ---- row-axis tiling: balanced tiles -> minimal padding ----
    row_align = 16 if compute_dtype.itemsize < 4 else 8
    nm = max(1, _cdiv(N, max(max_tile_m, row_align)))
    # v7x has 2 TensorCores per chip: split a big-enough (1, 1) grid 2-way.
    if nm == 1 and grid_c == 1 and N >= 256:
        nm = 2
    tile_m = _round_up(_cdiv(N, nm), row_align)
    Np = tile_m * nm
    if Np != N:
        x = jnp.pad(x, ((0, Np - N), (0, 0)))

    grid = (nm, grid_c)

    # ---- VMEM budget: double-buffered tiles + headroom, capped to real HW ----
    buf_bytes = 2 * (tile_m * D * x_itemsize
                     + D * tile_c * w_itemsize
                     + tile_c * 4
                     + tile_m * tile_c * out_itemsize)
    try:
        vmem_cap = int(pltpu.get_tpu_info().vmem_capacity_bytes)
    except Exception:
        vmem_cap = 64 << 20              # v7x-safe fallback (smallest VMEM)
    vmem_limit = int(min(max(buf_bytes * 1.3, 16 << 20), int(vmem_cap * 0.75)))

    weight_passes = 1 if grid_c == 1 else nm
    cost = pl.CostEstimate(
        flops=2 * Np * Cp * D,
        transcendentals=0,
        bytes_accessed=(Np * D * x_itemsize
                        + weight_passes * D * Cp * w_itemsize
                        + Cp * 4
                        + Np * Cp * out_itemsize),
    )

    out = pl.pallas_call(
        _make_logits_kernel(compute_dtype),
        out_shape=jax.ShapeDtypeStruct((Np, Cp), out_dtype),
        grid_spec=pltpu.PrefetchScalarGridSpec(
            num_scalar_prefetch=0,
            grid=grid,
            in_specs=[
                pl.BlockSpec((tile_m, D), lambda i, j: (i, 0)),   # x row tile
                pl.BlockSpec((D, tile_c), lambda i, j: (0, j)),   # weight tile
                pl.BlockSpec((1, tile_c), lambda i, j: (0, j)),   # bias tile
            ],
            out_specs=pl.BlockSpec((tile_m, tile_c), lambda i, j: (i, j)),
        ),
        compiler_params=pltpu.CompilerParams(
            dimension_semantics=("parallel", "parallel"),
            vmem_limit_bytes=vmem_limit,
        ),
        cost_estimate=cost,
    )(x, wt, bias2d)

    return out[:N, :num_classes]


# ---------------------------------------------------------------------------
# Convenience wrapper (prep + call). For repeated calls with the same weights,
# call prepare_selector_params once and use selector_logits_prepared directly.
# ---------------------------------------------------------------------------
def selector_get_logits(x, relation_weight, bias, *, compute_dtype=jnp.float32,
                        out_dtype=jnp.float32, **tiling_kwargs):
    wt, bias2d, C = prepare_selector_params(
        relation_weight, bias, compute_dtype=compute_dtype)
    return selector_logits_prepared(
        x, wt, bias2d, C, compute_dtype=compute_dtype, out_dtype=out_dtype,
        **tiling_kwargs)


def init_selector_params(key, num_classes, s_relation_dim, p_relation_dim,
                         word_vec_dim):
    """Deterministic parameter init mirroring Selector.init_weights()."""
    D = s_relation_dim + p_relation_dim + 2 * word_vec_dim
    k_rel, k_bias, k_att = jax.random.split(key, 3)
    # xavier_uniform on a (C, D) matrix: bound = sqrt(6 / (fan_in + fan_out))
    bound = math.sqrt(6.0 / (num_classes + D))
    relation_weight = jax.random.uniform(
        k_rel, (num_classes, D), jnp.float32, minval=-bound, maxval=bound)
    attention_weight = jax.random.uniform(
        k_att, (num_classes, D), jnp.float32, minval=-bound, maxval=bound)
    # nn.init.normal: standard normal
    bias = jax.random.normal(k_bias, (num_classes,), jnp.float32)
    return relation_weight, attention_weight, bias


if __name__ == "__main__":
    # Shapes consistent with the module:
    #   word_vec_dim = 32, s_relation_dim = 32, p_relation_dim = 32
    #   -> D = 32 + 32 + 2*32 = 128 ;  num_classes = 16 ;  N = 16 rows.
    num_classes = 16
    s_relation_dim = 32
    p_relation_dim = 32
    word_vec_dim = 32
    N = 16
    D = s_relation_dim + p_relation_dim + 2 * word_vec_dim

    key = jax.random.PRNGKey(0)
    k_params, k_x, k_misc = jax.random.split(key, 3)
    relation_weight, attention_weight, bias = init_selector_params(
        k_params, num_classes, s_relation_dim, p_relation_dim, word_vec_dim)

    x = jax.random.normal(k_x, (N, D), jnp.float32)

    # Pure-JAX reference of Selector.get_logits
    ref = x @ relation_weight.T + bias

    # f32 path with hoisted one-time weight prep (the intended hot-path usage).
    wt_f32, bias2d_f32, C = prepare_selector_params(
        relation_weight, bias, compute_dtype=jnp.float32)
    logits = selector_logits_prepared(x, wt_f32, bias2d_f32, C)
    logits = jax.block_until_ready(logits)
    assert logits.shape == (N, num_classes)
    assert jnp.allclose(logits, ref, atol=1e-4, rtol=1e-4), "f32 mismatch"

    # bf16 MXU path: weight prepared in bf16 once, x cast in-kernel.
    logits_bf16 = selector_get_logits(
        x, relation_weight, bias, compute_dtype=jnp.bfloat16)
    logits_bf16 = jax.block_until_ready(logits_bf16)
    assert logits_bf16.shape == (N, num_classes)
    assert jnp.allclose(logits_bf16, ref, atol=1e-1, rtol=5e-2), "bf16 mismatch"

    # Larger, non-aligned shapes: exercises balanced row tiles + minimal
    # padding (N=600 -> Np=608), the weight-resident path, and (with the knobs
    # forced) the streamed-weight path with a multi-block class grid.
    N2, C2 = 600, 200
    k_w2, k_b2 = jax.random.split(k_misc)
    w2 = jax.random.normal(k_w2, (C2, D), jnp.float32) * 0.05
    b2 = jax.random.normal(k_b2, (C2,), jnp.float32)
    x2 = jax.random.normal(k_x, (N2, D), jnp.float32)
    ref2 = x2 @ w2.T + b2
    out2_resident = selector_get_logits(x2, w2, b2)
    out2_streamed = selector_get_logits(x2, w2, b2, max_tile_c=128,
                                        weight_resident_bytes=0)
    out2_resident = jax.block_until_ready(out2_resident)
    out2_streamed = jax.block_until_ready(out2_streamed)
    assert out2_resident.shape == (N2, C2)
    assert out2_streamed.shape == (N2, C2)
    assert jnp.allclose(out2_resident, ref2, atol=2e-3, rtol=2e-3), "resident mismatch"
    assert jnp.allclose(out2_streamed, ref2, atol=2e-3, rtol=2e-3), "streamed mismatch"

    print("KERNEL_OK")
</pallas_src>

<mosaic_0001>
module attributes {stable_mosaic.version = 11 : i64} {
  func.func @kernel(%arg0: i32, %arg1: i32, %arg2: memref<16x128xf32, #tpu.memory_space<vmem>>, %arg3: memref<128x128xf32, #tpu.memory_space<vmem>>, %arg4: memref<1x128xf32, #tpu.memory_space<vmem>>, %arg5: memref<16x128xf32, #tpu.memory_space<vmem>>) attributes {dimension_semantics = [#tpu.dimension_semantics<parallel>, #tpu.dimension_semantics<parallel>], iteration_bounds = array<i64: 1, 1>, scalar_prefetch = 0 : i64, scratch_operands = 0 : i64, tpu.core_type = #tpu.core_type<tc>, window_params = [{transform_indices = @transform_0, window_bounds = array<i64: 16, 128>}, {transform_indices = @transform_1, window_bounds = array<i64: 128, 128>}, {transform_indices = @transform_2, window_bounds = array<i64: 1, 128>}, {transform_indices = @transform_3, window_bounds = array<i64: 16, 128>}]} {
    %c0 = arith.constant 0 : index
    %c0_0 = arith.constant 0 : index
    %0 = vector.load %arg2[%c0, %c0_0] : memref<16x128xf32, #tpu.memory_space<vmem>>, vector<16x128xf32>
    %c0_1 = arith.constant 0 : index
    %c0_2 = arith.constant 0 : index
    %1 = vector.load %arg3[%c0_1, %c0_2] : memref<128x128xf32, #tpu.memory_space<vmem>>, vector<128x128xf32>
    %cst = arith.constant dense<0.000000e+00> : vector<16x128xf32>
    %2 = tpu.matmul %0, %1, %cst {dimension_numbers = #tpu.dot_dimension_numbers<[1], [0], [0], [1], [0, 0, 1, 1], [], []>} : vector<16x128xf32>, vector<128x128xf32>, vector<16x128xf32> -> vector<16x128xf32>
    %c0_3 = arith.constant 0 : index
    %c0_4 = arith.constant 0 : index
    %3 = vector.load %arg4[%c0_3, %c0_4] : memref<1x128xf32, #tpu.memory_space<vmem>>, vector<1x128xf32>
    %4 = vector.broadcast %3 : vector<1x128xf32> to vector<16x128xf32>
    %5 = arith.addf %2, %4 : vector<16x128xf32>
    %c0_5 = arith.constant 0 : index
    %c0_6 = arith.constant 0 : index
    %6 = vector.load %arg5[%c0_5, %c0_6] : memref<16x128xf32, #tpu.memory_space<vmem>>, vector<16x128xf32>
    tpu.vector_store %arg5[%c0_5, %c0_6], %5 {strides = array<i32>} : memref<16x128xf32, #tpu.memory_space<vmem>>, vector<16x128xf32>,
    return
  }
  func.func @transform_0(%arg0: i32, %arg1: i32) -> (i32, i32) {
    %c0_i32 = arith.constant 0 : i32
    %c0_i32_0 = arith.constant 0 : i32
    return %arg0, %c0_i32 : i32, i32
  }
  func.func @transform_1(%arg0: i32, %arg1: i32) -> (i32, i32) {
    %c0_i32 = arith.constant 0 : i32
    %c0_i32_0 = arith.constant 0 : i32
    return %c0_i32, %arg1 : i32, i32
  }
  func.func @transform_2(%arg0: i32, %arg1: i32) -> (i32, i32) {
    %c0_i32 = arith.constant 0 : i32
    %c0_i32_0 = arith.constant 0 : i32
    return %c0_i32, %arg1 : i32, i32
  }
  func.func @transform_3(%arg0: i32, %arg1: i32) -> (i32, i32) {
    %c0_i32 = arith.constant 0 : i32
    return %arg0, %arg1 : i32, i32
  }
}

</mosaic_0001>

<llo_original>
// kernel: tpu_custom_call.1
$region0: #{tpu_custom_call.1}
  #allocation0 [shape = 'u32[]', space=smem, size = 0x4, offset = 0x4, fixed_abs, tag = 'smem constant byte address 0x4 - core index']
  #allocation1 [shape = 'u32[144,128]{1,0:T(1,128)}', space=vmem, size = 0x12000, scoped, tag = 'internal scratch']
  %s0 = inlined_call_operand.hbm [shape: f32[16,128], index: 0, kind: input, shape index: {}]
  %s1 = inlined_call_operand.hbm [shape: f32[128,128], index: 1, kind: input, shape index: {}]
  %s2 = inlined_call_operand.vmem [shape: f32[1,128], index: 2, kind: input, shape index: {}]
  %s3 = inlined_call_operand.hbm [shape: f32[16,128], index: 3, kind: output, shape index: {}]
  %s4 = sld [smem:[#allocation0]]
  $region30: #{tpu_custom_call.1} parent=0
    _
  %s6 = ssub.s32 1, %s4
  %s7 = scalar_select 0, %s6, %s4
  $region1: #{tpu_custom_call.1} parent=0
    #allocation2 [shape = 'u8[8192]{0}', space=vmem, size = 0x2000, scoped, tag = 'input window, operand 0, single buffered']
    #allocation3 [shape = 's32[1]{0}', space=sflag, size = 0x4, scoped, tag = 'scoped memory for tpu_custom_call.1']
    #allocation4 [shape = 's32[1]{0}', space=sflag, size = 0x4, scoped, tag = 'scoped memory for tpu_custom_call.1']
    #allocation5 [shape = 'u8[65536]{0}', space=vmem, size = 0x10000, scoped, tag = 'input window, operand 1, single buffered']
    #allocation6 [shape = 's32[1]{0}', space=sflag, size = 0x4, scoped, tag = 'scoped memory for tpu_custom_call.1']
    #allocation7 [shape = 'u8[8192]{0}', space=vmem, size = 0x2000, scoped, tag = 'output window, operand 0, single buffered']
    %8 = vsyncpa [#allocation3], 0
    %9 = vsyncpa [#allocation6], 0
    %10 = vsyncpa [#allocation4], 0
    // Predicated region
    $region2: #{tpu_custom_call.1} parent=1 // pred_check
      _
    $region3: #{tpu_custom_call.1} parent=1 // pred_check_branch
      %12 = sbr.rel (0) target = $region5
    $region4: #{tpu_custom_call.1} parent=1 // pred_region
      %s14 = ssub.s32 256, 256
      %15 = vsyncadd [#allocation3], %s14
      %s16 = sshll.u32 [#allocation2], 4
      %s17 = int_to_ptr.vmem [resolvable:$true] %s16
      %22 = dma.hbm_to_vmem [thread:$0]  %s0, 256, %s17, [#allocation3], 128, 128, 8
    $region5: #{tpu_custom_call.1} parent=1 // pred_fallthru
      _
    // Predicated region
    $region6: #{tpu_custom_call.1} parent=1 // pred_check
      _
    $region7: #{tpu_custom_call.1} parent=1 // pred_check_branch
      %24 = sbr.rel (0) target = $region9
    $region8: #{tpu_custom_call.1} parent=1 // pred_region
      %s26 = ssub.s32 2048, 2048
      %27 = vsyncadd [#allocation6], %s26
      %s28 = sshll.u32 [#allocation5], 4
      %s29 = int_to_ptr.vmem [resolvable:$true] %s28
      %34 = dma.hbm_to_vmem [thread:$0]  %s1, 2048, %s29, [#allocation6], 128, 128, 8
    $region9: #{tpu_custom_call.1} parent=1 // pred_fallthru
      _
    // Predicated region
    $region10: #{tpu_custom_call.1} parent=1 // pred_check
      _
    $region11: #{tpu_custom_call.1} parent=1 // pred_check_branch
      %36 = sbr.rel (0) target = $region13
    $region12: #{tpu_custom_call.1} parent=1 // pred_region
      _
    $region13: #{tpu_custom_call.1} parent=1 // pred_fallthru
      _
    // Predicated region
    $region14: #{tpu_custom_call.1} parent=1 // pred_check
      _
    $region15: #{tpu_custom_call.1} parent=1 // pred_check_branch
      %38 = sbr.rel (0) target = $region17
    $region16: #{tpu_custom_call.1} parent=1 // pred_region
      %39 = dma.done [#allocation3], 256
    $region17: #{tpu_custom_call.1} parent=1 // pred_fallthru
      _
    // Predicated region
    $region18: #{tpu_custom_call.1} parent=1 // pred_check
      _
    $region19: #{tpu_custom_call.1} parent=1 // pred_check_branch
      %41 = sbr.rel (0) target = $region21
    $region20: #{tpu_custom_call.1} parent=1 // pred_region
      %42 = dma.done [#allocation6], 2048
    $region21: #{tpu_custom_call.1} parent=1 // pred_fallthru
      _
    %v43 = vld [vmem:[#allocation2] sm:$0xff]
    %v44 = vld [vmem:[#allocation2 + $0x8] sm:$0xff]
    %v45 = vld [vmem:[#allocation5] sm:$0xff]
    %v46 = vld [vmem:[#allocation5 + $0x8] sm:$0xff]
    %v47 = vld [vmem:[#allocation5 + $0x10] sm:$0xff]
    %v48 = vld [vmem:[#allocation5 + $0x18] sm:$0xff]
    %v49 = vld [vmem:[#allocation5 + $0x20] sm:$0xff]
    %v50 = vld [vmem:[#allocation5 + $0x28] sm:$0xff]
    %v51 = vld [vmem:[#allocation5 + $0x30] sm:$0xff]
    %v52 = vld [vmem:[#allocation5 + $0x38] sm:$0xff]
    %v53 = vld [vmem:[#allocation5 + $0x40] sm:$0xff]
    %v54 = vld [vmem:[#allocation5 + $0x48] sm:$0xff]
    %v55 = vld [vmem:[#allocation5 + $0x50] sm:$0xff]
    %v56 = vld [vmem:[#allocation5 + $0x58] sm:$0xff]
    %v57 = vld [vmem:[#allocation5 + $0x60] sm:$0xff]
    %v58 = vld [vmem:[#allocation5 + $0x68] sm:$0xff]
    %v59 = vld [vmem:[#allocation5 + $0x70] sm:$0xff]
    %v60 = vld [vmem:[#allocation5 + $0x78] sm:$0xff]
    %v61 = vld [vmem:[%s2] sm:$0x1]
    %v63 = vlaneseq
    %v64 = vshrl.u32 %v63, 7
    %v65 = vsub.s32 0, %v64
    %v66 = vrot.slane %v61, %v65
    %68 = vmatprep.subr.mxu0 0.0
    %69 = vmatpush1.msra.mxu0 %v45
    %70 = vmatprep.subr.mxu0 0.0
    %71 = vmatpush1.msra.mxu0 %v46
    %72 = vmatprep.subr.mxu0 0.0
    %73 = vmatpush1.msra.mxu0 %v47
    %74 = vmatprep.subr.mxu0 0.0
    %75 = vmatpush1.msra.mxu0 %v48
    %76 = vmatprep.subr.mxu0 0.0
    %77 = vmatpush1.msra.mxu0 %v49
    %78 = vmatprep.subr.mxu0 0.0
    %79 = vmatpush1.msra.mxu0 %v50
    %80 = vmatprep.subr.mxu0 0.0
    %81 = vmatpush1.msra.mxu0 %v51
    %82 = vmatprep.subr.mxu0 0.0
    %83 = vmatpush1.msra.mxu0 %v52
    %84 = vmatprep.subr.mxu0 0.0
    %85 = vmatpush1.msra.mxu0 %v53
    %86 = vmatprep.subr.mxu0 0.0
    %87 = vmatpush1.msra.mxu0 %v54
    %88 = vmatprep.subr.mxu0 0.0
    %89 = vmatpush1.msra.mxu0 %v55
    %90 = vmatprep.subr.mxu0 0.0
    %91 = vmatpush1.msra.mxu0 %v56
    %92 = vmatprep.subr.mxu0 0.0
    %93 = vmatpush1.msra.mxu0 %v57
    %94 = vmatprep.subr.mxu0 0.0
    %95 = vmatpush1.msra.mxu0 %v58
    %96 = vmatprep.subr.mxu0 0.0
    %97 = vmatpush1.msra.mxu0 %v59
    %98 = vmatprep.subr.mxu0 0.0
    %99 = vmatpush1.msra.mxu0 %v60
    %100 = vmatprep.subr.mxu0 0.0
    %101 = vmatpush1.msra.mxu0 0.0
    %102 = vmatprep.subr.mxu0 0.0
    %103 = vmatpush1.msra.mxu0 0.0
    %104 = vmatprep.subr.mxu0 0.0
    %105 = vmatpush1.msra.mxu0 0.0
    %106 = vmatprep.subr.mxu0 0.0
    %107 = vmatpush1.msra.mxu0 0.0
    %108 = vmatprep.subr.mxu0 0.0
    %109 = vmatpush1.msra.mxu0 0.0
    %110 = vmatprep.subr.mxu0 0.0
    %111 = vmatpush1.msra.mxu0 0.0
    %112 = vmatprep.subr.mxu0 0.0
    %113 = vmatpush1.msra.mxu0 0.0
    %114 = vmatprep.subr.mxu0 0.0
    %115 = vmatpush1.msra.mxu0 0.0
    %116 = vmatprep.subr.mxu0 0.0
    %117 = vmatpush1.msra.mxu0 0.0
    %118 = vmatprep.subr.mxu0 0.0
    %119 = vmatpush1.msra.mxu0 0.0
    %120 = vmatprep.subr.mxu0 0.0
    %121 = vmatpush1.msra.mxu0 0.0
    %122 = vmatprep.subr.mxu0 0.0
    %123 = vmatpush1.msra.mxu0 0.0
    %124 = vmatprep.subr.mxu0 0.0
    %125 = vmatpush1.msra.mxu0 0.0
    %126 = vmatprep.subr.mxu0 0.0
    %127 = vmatpush1.msra.mxu0 0.0
    %128 = vmatprep.subr.mxu0 0.0
    %129 = vmatpush1.msra.mxu0 0.0
    %130 = vmatprep.subr.mxu0 0.0
    %131 = vmatpush1.msra.mxu0 0.0
    %132 = vmatprep.mubr.f32.mxu0 0.0
    %133 = vmatmul.mubr.f32.gmra.mrb[0].mxu0 %v43
    %v134 = vpop.f32.mrb[0].mxu0
    %v135 = vadd.f32 %v66, %v134
    %v136 = vpop.f32.mrb[0].mxu0
    %137 = vmatprep.mubr.f32.mxu0 0.0
    %138 = vmatmul.mubr.f32.gmra.mrb[0].mxu0 %v44
    %v139 = vpop.f32.mrb[0].mxu0
    %v140 = vadd.f32 %v66, %v139
    %v141 = vpop.f32.mrb[0].mxu0
    %142 = vdwg.mxu0
    %143 = vst [vmem:[#allocation7] sm:$0xff] %v135
    %144 = vst [vmem:[#allocation7 + $0x8] sm:$0xff] %v140
    // Predicated region
    $region22: #{tpu_custom_call.1} parent=1 // pred_check
      _
    $region23: #{tpu_custom_call.1} parent=1 // pred_check_branch
      %146 = sbr.rel (0) target = $region25
    $region24: #{tpu_custom_call.1} parent=1 // pred_region
      %s148 = ssub.s32 256, 256
      %149 = vsyncadd [#allocation4], %s148
      %s150 = sshll.u32 [#allocation7], 4
      %s151 = int_to_ptr.vmem [resolvable:$true] %s150
      %156 = dma.vmem_to_hbm [thread:$0]  %s151, 256, %s3, [#allocation4], 128, 128, 8
    $region25: #{tpu_custom_call.1} parent=1 // pred_fallthru
      _
    // Predicated region
    $region26: #{tpu_custom_call.1} parent=1 // pred_check
      _
    $region27: #{tpu_custom_call.1} parent=1 // pred_check_branch
      %158 = sbr.rel (0) target = $region29
    $region28: #{tpu_custom_call.1} parent=1 // pred_region
      %159 = dma.done [#allocation4], 256
    $region29: #{tpu_custom_call.1} parent=1 // pred_fallthru
      _
    %160 = vsyncpa [#allocation3], 1
    %161 = vsyncpa [#allocation6], 1
    %162 = vsyncpa [#allocation4], 1

</llo_original>
